<compile_context>
chip_gen: v6e
topology: v6e:2x2x1
jax: 0.10.0
libtpu: 0.0.40
codegen_flags: <defaults>
</compile_context>

<pallas_src>
import functools
import math

import numpy as np
import jax
import jax.numpy as jnp
from jax.experimental import pallas as pl
from jax.experimental.pallas import tpu as pltpu

_GCONST_ = -0.9189385332046727  # -0.5 * log(2*pi)


def positionalencoding2d(D, H, W):
    """NumPy port of the reference positionalencoding2d (returns (D, H, W))."""
    if D % 4 != 0:
        raise ValueError("D must be divisible by 4")
    P = np.zeros((D, H, W), dtype=np.float32)
    D2 = D // 2
    div_term = np.exp(np.arange(0.0, D2, 2) * -(math.log(10000.0) / D2))
    pos_w = np.arange(0.0, W)[:, None]
    pos_h = np.arange(0.0, H)[:, None]
    P[0:D2:2, :, :] = np.repeat(np.sin(pos_w * div_term).T[:, None, :], H, axis=1)
    P[1:D2:2, :, :] = np.repeat(np.cos(pos_w * div_term).T[:, None, :], H, axis=1)
    P[D2::2, :, :] = np.repeat(np.sin(pos_h * div_term).T[:, :, None], W, axis=2)
    P[D2 + 1::2, :, :] = np.repeat(np.cos(pos_h * div_term).T[:, :, None], W, axis=2)
    return P


@functools.lru_cache(maxsize=None)
def _pos_enc_cached(D, H, W):
    return jnp.asarray(positionalencoding2d(D, H, W))


def _pick_block(S_pad, C, budget_bytes=12 * 2**20, n_max=8192):
    """Largest multiple of 128 dividing S_pad that fits the VMEM budget.

    Budget: (3 streamed C-rows + logdet + 2 output rows) * 4 B * double-buffer.
    Prefers an N that leaves >= 2 blocks on the parallel axis (v7x megacore).
    """
    per_col = (3 * C + 3) * 4 * 2
    cap = min(n_max, max(128, (budget_bytes // per_col) // 128 * 128))
    divisors = [n for n in range(128, S_pad + 1, 128)
                if S_pad % n == 0 and n <= cap]
    if not divisors:
        return 128
    multi = [n for n in divisors if S_pad // n >= 2]
    return max(multi) if multi else max(divisors)


def _flow_logp_kernel(exps_ref, t_ref, ld_ref, e_ref, out_ref, *, C):
    """One (C, N) activation tile: affine flow + get_logp + loss (pure VPU)."""
    e = e_ref[...]                                                    # (C, N)
    # conditional affine flow: z = e * exp(s) + t (exp(s), t precomputed)
    z = e * exps_ref[...] + t_ref[...]                                # (C, N)
    # get_logp: C*_GCONST_ - 0.5*sum(z^2) + logdet_J, normalized by C
    logp = (C * _GCONST_
            - 0.5 * jnp.sum(z * z, axis=0, keepdims=True)
            + ld_ref[...])                                            # (1, N)
    log_prob = logp * (1.0 / C)                                       # (1, N)
    # loss = -log_sigmoid(x) = softplus(-x) = max(-x, 0) + log1p(exp(-|x|))
    x = log_prob
    loss = jnp.maximum(-x, 0.0) + jnp.log1p(jnp.exp(-jnp.abs(x)))     # (1, N)
    out_ref[0:1, :] = log_prob
    out_ref[1:2, :] = loss


@jax.jit
def _layer_forward(e, p, w1, b1, ws, bs, wt, bt):
    """One pool layer: returns (log_prob (B*S,), loss_sum scalar) on device."""
    B, C, H, W = e.shape
    S = H * W
    Pc = p.shape[0]

    # --- batch-invariant conditioning precomputed once (plain XLA, tiny) ---
    c_r = p.reshape(Pc, S).T                                          # (S, P)
    h = jnp.tanh(c_r @ w1 + b1)                                       # (S, Hd)
    s = 0.5 * jnp.tanh(h @ ws + bs)                                   # (S, C)
    t = h @ wt + bt                                                   # (S, C)
    exp_s = jnp.exp(s).T                                              # (C, S)
    t_t = t.T                                                         # (C, S)
    logdet = jnp.sum(s, axis=1)[None, :]                              # (1, S)

    # --- pad the position axis to a lane multiple; keep e in (B, C, S) ---
    S_pad = ((S + 127) // 128) * 128
    e3 = e.reshape(B, C, S)
    if S_pad != S:
        pad = S_pad - S
        e3 = jnp.pad(e3, ((0, 0), (0, 0), (0, pad)))
        exp_s = jnp.pad(exp_s, ((0, 0), (0, pad)))
        t_t = jnp.pad(t_t, ((0, 0), (0, pad)))
        logdet = jnp.pad(logdet, ((0, 0), (0, pad)))

    N = _pick_block(S_pad, C)
    nj = S_pad // N

    kernel = functools.partial(_flow_logp_kernel, C=C)
    # grid = (nj, B): position blocks outer ('parallel'), batch inner
    # ('arbitrary') so the conditioning blocks keep the same index across
    # consecutive steps and their DMA is skipped for B-1 images.
    out = pl.pallas_call(
        kernel,
        out_shape=jax.ShapeDtypeStruct((B, 2, S_pad), jnp.float32),
        grid=(nj, B),
        in_specs=[
            pl.BlockSpec((C, N), lambda j, b: (0, j)),          # exp(s)
            pl.BlockSpec((C, N), lambda j, b: (0, j)),          # t
            pl.BlockSpec((1, N), lambda j, b: (0, j)),          # log|det J|
            pl.BlockSpec((None, C, N), lambda j, b: (b, 0, j)),  # e (squeezed B)
        ],
        out_specs=pl.BlockSpec((None, 2, N), lambda j, b: (b, 0, j)),
        compiler_params=pltpu.CompilerParams(
            dimension_semantics=("parallel", "arbitrary")),
    )(exp_s, t_t, logdet, e3)

    log_prob = out[:, 0, :S].reshape(B * S)                           # b-major
    loss_sum = jnp.sum(out[:, 1, :S])
    return log_prob, loss_sum


def decoder_forward(activations, decoder_params, condition_vec):
    """JAX/Pallas equivalent of Decoder.forward(pool_layers)."""
    P = condition_vec
    height, width = [], []
    dist_dev, loss_sums = [], []
    test_count = 0
    for l, e in enumerate(activations):
        B, C, H, W = e.shape
        height.append(H)
        width.append(W)
        p = _pos_enc_cached(P, H, W)
        w1, b1, ws, bs, wt, bt = decoder_params[l]
        log_prob, loss_sum = _layer_forward(e, p, w1, b1, ws, bs, wt, bt)
        dist_dev.append(log_prob)
        loss_sums.append(loss_sum)
        test_count += B * H * W
    total_loss = functools.reduce(lambda a, b: a + b, loss_sums)
    # single host sync / transfer for everything
    total_loss, dist_host = jax.block_until_ready((total_loss, dist_dev))
    test_dist = [np.asarray(d).tolist() for d in dist_host]
    return height, width, test_dist, float(total_loss), test_count


def _reference_layer(e_r, c_r, w1, b1, ws, bs, wt, bt, C):
    """Pure-jnp reference (row-major, un-fused), for verification."""
    h = jnp.tanh(c_r @ w1 + b1)
    s = 0.5 * jnp.tanh(h @ ws + bs)
    t = h @ wt + bt
    z = e_r * jnp.exp(s) + t
    logdet = jnp.sum(s, axis=1)
    logp = C * _GCONST_ - 0.5 * jnp.sum(z * z, axis=1) + logdet
    log_prob = logp / C
    loss = -jax.nn.log_sigmoid(log_prob)
    return log_prob, loss


def _make_rowmajor_inputs(e, P_COND):
    B, C, H, W = e.shape
    S, E = H * W, B * H * W
    p = jnp.asarray(positionalencoding2d(P_COND, H, W))
    c_r = jnp.broadcast_to(p[None], (B, P_COND, H, W)).reshape(B, P_COND, S)
    c_r = c_r.transpose(0, 2, 1).reshape(E, P_COND)
    e_r = e.reshape(B, C, S).transpose(0, 2, 1).reshape(E, C)
    return e_r, c_r


if __name__ == "__main__":
    key = jax.random.PRNGKey(0)
    P_COND = 32    # c.condition_vec
    HID = 64       # hidden width of the synthetic conditioning MLP
    # pool layers: (B, C, H, W); last one exercises the S % 128 != 0 pad path
    layer_cfgs = [(2, 16, 16, 16), (2, 32, 16, 8), (2, 32, 8, 8)]

    activations = []
    decoder_params = []
    for (B, C, H, W) in layer_cfgs:
        key, ka, k1, k2, k3 = jax.random.split(key, 5)
        activations.append(jax.random.normal(ka, (B, C, H, W), jnp.float32))
        w1 = 0.1 * jax.random.normal(k1, (P_COND, HID), jnp.float32)
        ws = 0.1 * jax.random.normal(k2, (HID, C), jnp.float32)
        wt = 0.1 * jax.random.normal(k3, (HID, C), jnp.float32)
        b1 = jnp.zeros((1, HID), jnp.float32)
        bs = jnp.zeros((1, C), jnp.float32)
        bt = jnp.zeros((1, C), jnp.float32)
        decoder_params.append((w1, b1, ws, bs, wt, bt))

    height, width, test_dist, test_loss, test_count = decoder_forward(
        activations, decoder_params, P_COND)

    # correctness checks against the pure-jnp reference (all layers);
    # tolerances tightened vs the previous version since everything is f32.
    ref_loss_total = 0.0
    for l in range(len(layer_cfgs)):
        B, C, H, W = layer_cfgs[l]
        e_r, c_r = _make_rowmajor_inputs(activations[l], P_COND)
        ref_lp, ref_ls = _reference_layer(e_r, c_r, *decoder_params[l], C)
        ref_loss_total += float(jnp.sum(ref_ls))
        got_lp = np.asarray(test_dist[l])
        assert np.allclose(got_lp, np.asarray(ref_lp), rtol=1e-4, atol=1e-4), \
            f"Pallas kernel mismatch vs reference on layer {l}"

    assert height == [16, 16, 8] and width == [16, 8, 8]
    assert test_count == sum(b * h * w for (b, _, h, w) in layer_cfgs)
    assert np.isfinite(test_loss)
    assert abs(test_loss - ref_loss_total) <= 1e-3 * max(1.0, abs(ref_loss_total)), \
        "total loss mismatch vs reference"
    print("KERNEL_OK")
</pallas_src>

<mosaic_0001>
module attributes {stable_mosaic.version = 11 : i64} {
  func.func @_flow_logp_kernel(%arg0: i32, %arg1: i32, %arg2: memref<16x128xf32, #tpu.memory_space<vmem>>, %arg3: memref<16x128xf32, #tpu.memory_space<vmem>>, %arg4: memref<1x128xf32, #tpu.memory_space<vmem>>, %arg5: memref<1x16x128xf32, #tpu.memory_space<vmem>>, %arg6: memref<1x2x128xf32, #tpu.memory_space<vmem>>) attributes {dimension_semantics = [#tpu.dimension_semantics<parallel>, #tpu.dimension_semantics<arbitrary>], iteration_bounds = array<i64: 2, 2>, scalar_prefetch = 0 : i64, scratch_operands = 0 : i64, tpu.core_type = #tpu.core_type<tc>, window_params = [{transform_indices = @transform_0, window_bounds = array<i64: 16, 128>}, {transform_indices = @transform_1, window_bounds = array<i64: 16, 128>}, {transform_indices = @transform_2, window_bounds = array<i64: 1, 128>}, {transform_indices = @transform_3, window_bounds = array<i64: 1, 16, 128>}, {transform_indices = @transform_4, window_bounds = array<i64: 1, 2, 128>}]} {
    %c0 = arith.constant 0 : index
    %c0_0 = arith.constant 0 : index
    %c0_1 = arith.constant 0 : index
    %0 = vector.load %arg5[%c0, %c0_0, %c0_1] : memref<1x16x128xf32, #tpu.memory_space<vmem>>, vector<1x16x128xf32>
    %1 = vector.shape_cast %0 : vector<1x16x128xf32> to vector<16x128xf32>
    %c0_2 = arith.constant 0 : index
    %c0_3 = arith.constant 0 : index
    %2 = vector.load %arg2[%c0_2, %c0_3] : memref<16x128xf32, #tpu.memory_space<vmem>>, vector<16x128xf32>
    %3 = arith.mulf %1, %2 : vector<16x128xf32>
    %c0_4 = arith.constant 0 : index
    %c0_5 = arith.constant 0 : index
    %4 = vector.load %arg3[%c0_4, %c0_5] : memref<16x128xf32, #tpu.memory_space<vmem>>, vector<16x128xf32>
    %5 = arith.addf %3, %4 : vector<16x128xf32>
    %6 = arith.mulf %5, %5 : vector<16x128xf32>
    %cst = arith.constant dense<0.000000e+00> : vector<128xf32>
    %7 = vector.multi_reduction <add>, %6, %cst [0] : vector<16x128xf32> to vector<128xf32>
    %8 = vector.shape_cast %7 : vector<128xf32> to vector<1x128xf32>
    %cst_6 = arith.constant 5.000000e-01 : f32
    %9 = vector.broadcast %cst_6 : f32 to vector<1x128xf32>
    %10 = arith.mulf %9, %8 : vector<1x128xf32>
    %cst_7 = arith.constant -14.7030163 : f32
    %11 = vector.broadcast %cst_7 : f32 to vector<1x128xf32>
    %12 = arith.subf %11, %10 : vector<1x128xf32>
    %c0_8 = arith.constant 0 : index
    %c0_9 = arith.constant 0 : index
    %13 = vector.load %arg4[%c0_8, %c0_9] : memref<1x128xf32, #tpu.memory_space<vmem>>, vector<1x128xf32>
    %14 = arith.addf %12, %13 : vector<1x128xf32>
    %cst_10 = arith.constant 6.250000e-02 : f32
    %15 = vector.broadcast %cst_10 : f32 to vector<1x128xf32>
    %16 = arith.mulf %14, %15 : vector<1x128xf32>
    %cst_11 = arith.constant 0.000000e+00 : f32
    %17 = vector.broadcast %cst_11 : f32 to vector<1x128xf32>
    %18 = arith.subf %17, %16 : vector<1x128xf32>
    %cst_12 = arith.constant 0.000000e+00 : f32
    %19 = vector.broadcast %cst_12 : f32 to vector<1x128xf32>
    %20 = arith.maximumf %18, %19 : vector<1x128xf32>
    %21 = math.absf %16 : vector<1x128xf32>
    %cst_13 = arith.constant 0.000000e+00 : f32
    %22 = vector.broadcast %cst_13 : f32 to vector<1x128xf32>
    %23 = arith.subf %22, %21 : vector<1x128xf32>
    %24 = math.exp %23 : vector<1x128xf32>
    %25 = math.log1p %24 : vector<1x128xf32>
    %26 = arith.addf %20, %25 : vector<1x128xf32>
    %c0_14 = arith.constant 0 : index
    %c0_15 = arith.constant 0 : index
    %c0_16 = arith.constant 0 : index
    %27 = vector.load %arg6[%c0_14, %c0_15, %c0_16] : memref<1x2x128xf32, #tpu.memory_space<vmem>>, vector<1x1x128xf32>
    %28 = vector.shape_cast %27 : vector<1x1x128xf32> to vector<1x128xf32>
    %29 = vector.shape_cast %16 : vector<1x128xf32> to vector<1x1x128xf32>
    tpu.vector_store %arg6[%c0_14, %c0_15, %c0_16], %29 {strides = array<i32>} : memref<1x2x128xf32, #tpu.memory_space<vmem>>, vector<1x1x128xf32>,
    %c0_17 = arith.constant 0 : index
    %c1 = arith.constant 1 : index
    %c0_18 = arith.constant 0 : index
    %30 = vector.load %arg6[%c0_17, %c1, %c0_18] : memref<1x2x128xf32, #tpu.memory_space<vmem>>, vector<1x1x128xf32>
    %31 = vector.shape_cast %30 : vector<1x1x128xf32> to vector<1x128xf32>
    %32 = vector.shape_cast %26 : vector<1x128xf32> to vector<1x1x128xf32>
    tpu.vector_store %arg6[%c0_17, %c1, %c0_18], %32 {strides = array<i32>} : memref<1x2x128xf32, #tpu.memory_space<vmem>>, vector<1x1x128xf32>,
    return
  }
  func.func @transform_0(%arg0: i32, %arg1: i32) -> (i32, i32) {
    %c0_i32 = arith.constant 0 : i32
    %c0_i32_0 = arith.constant 0 : i32
    return %c0_i32, %arg0 : i32, i32
  }
  func.func @transform_1(%arg0: i32, %arg1: i32) -> (i32, i32) {
    %c0_i32 = arith.constant 0 : i32
    %c0_i32_0 = arith.constant 0 : i32
    return %c0_i32, %arg0 : i32, i32
  }
  func.func @transform_2(%arg0: i32, %arg1: i32) -> (i32, i32) {
    %c0_i32 = arith.constant 0 : i32
    %c0_i32_0 = arith.constant 0 : i32
    return %c0_i32, %arg0 : i32, i32
  }
  func.func @transform_3(%arg0: i32, %arg1: i32) -> (i32, i32, i32) {
    %c0_i32 = arith.constant 0 : i32
    %c0_i32_0 = arith.constant 0 : i32
    return %arg1, %c0_i32, %arg0 : i32, i32, i32
  }
  func.func @transform_4(%arg0: i32, %arg1: i32) -> (i32, i32, i32) {
    %c0_i32 = arith.constant 0 : i32
    %c0_i32_0 = arith.constant 0 : i32
    return %arg1, %c0_i32, %arg0 : i32, i32, i32
  }
}

</mosaic_0001>

<llo_original>
// kernel: _layer_forward.1
$region0: #{_layer_forward.1}
  #allocation0 [shape = 'u32[]', space=smem, size = 0x4, offset = 0x4, fixed_abs, tag = 'smem constant byte address 0x4 - core index']
  #allocation1 [shape = 'u32[144,128]{1,0:T(1,128)}', space=vmem, size = 0x12000, scoped, tag = 'internal scratch']
  %s0 = inlined_call_operand.vmem [shape: f32[16,256], index: 0, kind: input, shape index: {}]
  %s1 = inlined_call_operand.vmem [shape: f32[16,256], index: 1, kind: input, shape index: {}]
  %s2 = inlined_call_operand.vmem [shape: f32[1,256], index: 2, kind: input, shape index: {}]
  %s3 = inlined_call_operand.vmem [shape: f32[2,16,256], index: 3, kind: input, shape index: {}]
  %s4 = inlined_call_operand.vmem [shape: f32[2,2,256], index: 4, kind: output, shape index: {}]
  %s5 = sld [smem:[#allocation0]]
  $region163: #{_layer_forward.1} parent=0
    _
  %s7 = ssub.s32 1, %s5
  %s8 = scalar_select 0, %s7, %s5
  $region1: #{_layer_forward.1} parent=0
    #allocation2 [shape = 'u8[16384]{0}', space=vmem, size = 0x4000, scoped, tag = 'input window, operand 0']
    #allocation3 [shape = 'u8[16384]{0}', space=vmem, size = 0x4000, scoped, tag = 'input window, operand 1']
    #allocation4 [shape = 'u8[16384]{0}', space=vmem, size = 0x4000, scoped, tag = 'input window, operand 3']
    loop: start=0, step=1, limit=6
    $region2: #{_layer_forward.1} parent=1 // loop_pre_header
      _
    $region3: #{_layer_forward.1} parent=1 // loop_header
      %s10 = sphi 0, %s14
      %p11 = scmp.ge.s32.totalorder %s10, 6
      %s17 = sphi 0, %s29
      %s18 = sphi 0, %s25
      %s19 = sphi 0, %s17
      %s20 = sphi 0, %s18
      %s21 = sphi 0, %s19
      %s22 = sphi 0, %s20
      %s32 = sphi 0, %s34
      %s35 = sphi 0, %s32
      %s36 = sphi 0, %s35
      %s52 = sphi 0, %s36
      %s58 = sphi 0, %s60
      %s61 = sphi 0, %s58
      %s62 = sphi 0, %s61
      %s78 = sphi 0, %s62
      %s84 = sphi 0, %s86
      %s87 = sphi 0, %s84
      %s88 = sphi 0, %s87
      %s104 = sphi 0, %s88
      %s112 = sphi 0, %s114
      %s115 = sphi 0, %s112
      %s116 = sphi 0, %s115
      %s132 = sphi 0, %s116
      %s140 = sphi 0, %s142
      %s143 = sphi 0, %s140
      %s144 = sphi 0, %s143
      %s160 = sphi 0, %s144
    $region4: #{_layer_forward.1} parent=1 // loop_header_branch
      %13 = sbr.rel (%p11) target = $region8
    $region5: #{_layer_forward.1} parent=1 // loop_body
      %s15 = ssub.s32 %s10, 1
      %s16 = ssub.s32 %s10, 2
      %s23 = sadd.s32 1, %s18
      %p24 = scmp.ge.s32.totalorder %s23, 2
      %s25 = scalar_select %p24, 0, %s23
      %s26 = sadd.s32 1, %s17
      %s27 = scalar_select %p24, %s26, %s17
      %p28 = scmp.ge.s32.totalorder %s27, 2
      %s29 = scalar_select %p28, 0, %s27
      %s30 = ssub.s32 %s17, %s29
      %p31 = scmp.eq.s32.totalorder %s30, 0
      %s33 = sadd.s32 %s32, 1
      %s34 = scalar_select %p31, %s32, %s33
      %p37 = pneg %p31
      %p38 = scmp.eq.s32.totalorder %s10, 3
      %p39 = por %p37, %p38
      %p40 = scmp.ne.s32.totalorder %s32, %s35
      %p41 = scmp.eq.s32.totalorder %s10, 0
      %p42 = por %p40, %p41
      %p43 = scmp.ne.s32.totalorder %s32, %s35
      %p44 = scmp.eq.s32.totalorder %s15, 3
      %p45 = por %p43, %p44
      %p46 = scmp.ne.s32.totalorder %s35, %s36
      %p47 = scmp.eq.s32.totalorder %s15, 0
      %p48 = por %p46, %p47
      %p49 = scmp.ne.s32.totalorder %s35, %s36
      %p50 = scmp.eq.s32.totalorder %s16, 3
      %p51 = por %p49, %p50
      %p53 = scmp.ne.s32.totalorder %s36, %s52
      %p54 = scmp.eq.s32.totalorder %s16, 0
      %p55 = por %p53, %p54
      %s56 = ssub.s32 %s17, %s29
      %p57 = scmp.eq.s32.totalorder %s56, 0
      %s59 = sadd.s32 %s58, 1
      %s60 = scalar_select %p57, %s58, %s59
      %p63 = pneg %p57
      %p64 = scmp.eq.s32.totalorder %s10, 3
      %p65 = por %p63, %p64
      %p66 = scmp.ne.s32.totalorder %s58, %s61
      %p67 = scmp.eq.s32.totalorder %s10, 0
      %p68 = por %p66, %p67
      %p69 = scmp.ne.s32.totalorder %s58, %s61
      %p70 = scmp.eq.s32.totalorder %s15, 3
      %p71 = por %p69, %p70
      %p72 = scmp.ne.s32.totalorder %s61, %s62
      %p73 = scmp.eq.s32.totalorder %s15, 0
      %p74 = por %p72, %p73
      %p75 = scmp.ne.s32.totalorder %s61, %s62
      %p76 = scmp.eq.s32.totalorder %s16, 3
      %p77 = por %p75, %p76
      %p79 = scmp.ne.s32.totalorder %s62, %s78
      %p80 = scmp.eq.s32.totalorder %s16, 0
      %p81 = por %p79, %p80
      %s82 = ssub.s32 %s17, %s29
      %p83 = scmp.eq.s32.totalorder %s82, 0
      %s85 = sadd.s32 %s84, 1
      %s86 = scalar_select %p83, %s84, %s85
      %p89 = pneg %p83
      %p90 = scmp.eq.s32.totalorder %s10, 3
      %p91 = por %p89, %p90
      %p92 = scmp.ne.s32.totalorder %s84, %s87
      %p93 = scmp.eq.s32.totalorder %s10, 0
      %p94 = por %p92, %p93
      %p95 = scmp.ne.s32.totalorder %s84, %s87
      %p96 = scmp.eq.s32.totalorder %s15, 3
      %p97 = por %p95, %p96
      %p98 = scmp.ne.s32.totalorder %s87, %s88
      %p99 = scmp.eq.s32.totalorder %s15, 0
      %p100 = por %p98, %p99
      %p101 = scmp.ne.s32.totalorder %s87, %s88
      %p102 = scmp.eq.s32.totalorder %s16, 3
      %p103 = por %p101, %p102
      %p105 = scmp.ne.s32.totalorder %s88, %s104
      %p106 = scmp.eq.s32.totalorder %s16, 0
      %p107 = por %p105, %p106
      %s108 = ssub.s32 %s18, %s25
      %s109 = ssub.s32 %s17, %s29
      %s110 = sor.u32 %s108, %s109
      %p111 = scmp.eq.s32.totalorder %s110, 0
      %s113 = sadd.s32 %s112, 1
      %s114 = scalar_select %p111, %s112, %s113
      %p117 = pneg %p111
      %p118 = scmp.eq.s32.totalorder %s10, 3
      %p119 = por %p117, %p118
      %p120 = scmp.ne.s32.totalorder %s112, %s115
      %p121 = scmp.eq.s32.totalorder %s10, 0
      %p122 = por %p120, %p121
      %p123 = scmp.ne.s32.totalorder %s112, %s115
      %p124 = scmp.eq.s32.totalorder %s15, 3
      %p125 = por %p123, %p124
      %p126 = scmp.ne.s32.totalorder %s115, %s116
      %p127 = scmp.eq.s32.totalorder %s15, 0
      %p128 = por %p126, %p127
      %p129 = scmp.ne.s32.totalorder %s115, %s116
      %p130 = scmp.eq.s32.totalorder %s16, 3
      %p131 = por %p129, %p130
      %p133 = scmp.ne.s32.totalorder %s116, %s132
      %p134 = scmp.eq.s32.totalorder %s16, 0
      %p135 = por %p133, %p134
      %s136 = ssub.s32 %s18, %s25
      %s137 = ssub.s32 %s17, %s29
      %s138 = sor.u32 %s136, %s137
      %p139 = scmp.eq.s32.totalorder %s138, 0
      %s141 = sadd.s32 %s140, 1
      %s142 = scalar_select %p139, %s140, %s141
      %p145 = pneg %p139
      %p146 = scmp.eq.s32.totalorder %s10, 3
      %p147 = por %p145, %p146
      %p148 = scmp.ne.s32.totalorder %s140, %s143
      %p149 = scmp.eq.s32.totalorder %s10, 0
      %p150 = por %p148, %p149
      %p151 = scmp.ne.s32.totalorder %s140, %s143
      %p152 = scmp.eq.s32.totalorder %s15, 3
      %p153 = por %p151, %p152
      %p154 = scmp.ne.s32.totalorder %s143, %s144
      %p155 = scmp.eq.s32.totalorder %s15, 0
      %p156 = por %p154, %p155
      %p157 = scmp.ne.s32.totalorder %s143, %s144
      %p158 = scmp.eq.s32.totalorder %s16, 3
      %p159 = por %p157, %p158
      %p161 = scmp.ne.s32.totalorder %s144, %s160
      %p162 = scmp.eq.s32.totalorder %s16, 0
      %p163 = por %p161, %p162
      %p164 = scmp.le.s32.totalorder 1, %s10
      %p165 = scmp.lt.s32.totalorder %s10, 5
      %p166 = pnand %p164, %p165
      %p167 = pneg %p166
      // Predicated region
      $region9: #{_layer_forward.1} parent=5 // pred_check
        _
      $region10: #{_layer_forward.1} parent=5 // pred_check_branch
        %169 = sbr.rel (%p166) target = $region12
      $region11: #{_layer_forward.1} parent=5 // pred_region
        %s170 = ssub.s32 %s10, 1
      $region12: #{_layer_forward.1} parent=5 // pred_fallthru
        _
      %p171 = scmp.lt.s32.totalorder %s10, 4
      // Predicated region
      $region13: #{_layer_forward.1} parent=5 // pred_check
        %p172 = pneg %p171
      $region14: #{_layer_forward.1} parent=5 // pred_check_branch
        %174 = sbr.rel (%p172) target = $region16
      $region15: #{_layer_forward.1} parent=5 // pred_region
        // Predicated region
        $region17: #{_layer_forward.1} parent=15 // pred_check
          %p175 = pneg %p42
        $region18: #{_layer_forward.1} parent=15 // pred_check_branch
          %177 = sbr.rel (%p175) target = $region20
        $region19: #{_layer_forward.1} parent=15 // pred_region
          %s178 = sand.u32 %s32, 1
          %s179 = sand.u32 %s32, 1
          %s180 = smul.addr %s179, 16
          %s181 = scalar_lea.vmem [#allocation2], %s180
          %s182 = smul.addr %s17, 8
          %s183 = scalar_lea.vmem %s0, %s182
          // Predicated region
          $region21: #{_layer_forward.1} parent=19 // pred_check
            _
          $region22: #{_layer_forward.1} parent=19 // pred_check_branch
            %185 = sbr.rel (0) target = $region24
          $region23: #{_layer_forward.1} parent=19 // pred_region
            // Predicated region
            $region25: #{_layer_forward.1} parent=23 // pred_check
              _
            $region26: #{_layer_forward.1} parent=23 // pred_check_branch
              %187 = sbr.rel (0) target = $region28
            $region27: #{_layer_forward.1} parent=23 // pred_region
              // Predicated region
              $region40: #{_layer_forward.1} parent=27 // pred_check
                _
              $region41: #{_layer_forward.1} parent=27 // pred_check_branch
                %205 = sbr.rel (0) target = $region43
              $region42: #{_layer_forward.1} parent=27 // pred_region
                loop: start=0, step=1, limit=1
                $region44: #{_layer_forward.1} parent=42 // loop_pre_header
                  _
                $region45: #{_layer_forward.1} parent=42 // loop_header
                  %s207 = sphi 0, %s211
                  %p208 = scmp.ge.s32.totalorder %s207, 1
                  %s212 = sphi %s183, %s183
                  %s213 = sphi %s181, %s181
                $region46: #{_layer_forward.1} parent=42 // loop_header_branch
                  %210 = sbr.rel (%p208) target = $region50
                $region47: #{_layer_forward.1} parent=42 // loop_body
                  %v214 = vld [vmem:[%s212] sm:$0xff]
                  %215 = vst [vmem:[%s213] sm:$0xff] %v214
                  %v216 = vld [vmem:[%s212 + $0x10] sm:$0xff]
                  %217 = vst [vmem:[%s213 + $0x8] sm:$0xff] %v216
                $region48: #{_layer_forward.1} parent=42 // loop_footer
                  %s211 = sadd.s32 1, %s207
                $region49: #{_layer_forward.1} parent=42 // loop_footer_branch
                  %206 = sbr.rel target = $region45
                $region50: #{_layer_forward.1} parent=42 // loop_exit
                  _
              $region43: #{_layer_forward.1} parent=27 // pred_fallthru
                _
              // Predicated region
              $region51: #{_layer_forward.1} parent=27 // pred_check
                _
              $region52: #{_layer_forward.1} parent=27 // pred_check_branch
                %219 = sbr.rel target = $region54
              $region53: #{_layer_forward.1} parent=27 // pred_region
                _
              $region54: #{_layer_forward.1} parent=27 // pred_fallthru
                _
            $region28: #{_layer_forward.1} parent=23 // pred_fallthru
              _
            // Predicated region
            $region29: #{_layer_forward.1} parent=23 // pred_check
              _
            $region30: #{_layer_forward.1} parent=23 // pred_check_branch
              %189 = sbr.rel target = $region32
            $region31: #{_layer_forward.1} parent=23 // pred_region
              %s191 = ssub.s32 256, 1
              loop: start=0, step=1, limit=1
              $region33: #{_layer_forward.1} parent=31 // loop_pre_header
                _
              $region34: #{_layer_forward.1} parent=31 // loop_header
                %s193 = sphi 0, %s197
                %p194 = scmp.ge.s32.totalorder %s193, 1
                %s198 = sphi %s183, %s183
                %s199 = sphi %s181, %s181
              $region35: #{_layer_forward.1} parent=31 // loop_header_branch
                %196 = sbr.rel (%p194) target = $region39
              $region36: #{_layer_forward.1} parent=31 // loop_body
                %v200 = vld [vmem:[%s198] sm:%s191]
                %201 = vst [vmem:[%s199] sm:%s191] %v200
                %v202 = vld [vmem:[%s198 + $0x10] sm:%s191]
                %203 = vst [vmem:[%s199 + $0x8] sm:%s191] %v202
              $region37: #{_layer_forward.1} parent=31 // loop_footer
                %s197 = sadd.s32 1, %s193
              $region38: #{_layer_forward.1} parent=31 // loop_footer_branch
                %192 = sbr.rel target = $region34
              $region39: #{_layer_forward.1} parent=31 // loop_exit
                _
            $region32: #{_layer_forward.1} parent=23 // pred_fallthru
              _
          $region24: #{_layer_forward.1} parent=19 // pred_fallthru
            _
          %220 = vnop
        $region20: #{_layer_forward.1} parent=15 // pred_fallthru
          _
        // Predicated region
        $region55: #{_layer_forward.1} parent=15 // pred_check
          %p221 = pneg %p68
        $region56: #{_layer_forward.1} parent=15 // pred_check_branch
          %223 = sbr.rel (%p221) target = $region58
        $region57: #{_layer_forward.1} parent=15 // pred_region
          %s224 = sand.u32 %s58, 1
          %s225 = sand.u32 %s58, 1
          %s226 = smul.addr %s225, 16
          %s227 = scalar_lea.vmem [#allocation3], %s226
          %s228 = smul.addr %s17, 8
          %s229 = scalar_lea.vmem %s1, %s228
          // Predicated region
          $region59: #{_layer_forward.1} parent=57 // pred_check
            _
          $region60: #{_layer_forward.1} parent=57 // pred_check_branch
            %231 = sbr.rel (0) target = $region62
          $region61: #{_layer_forward.1} parent=57 // pred_region
            // Predicated region
            $region63: #{_layer_forward.1} parent=61 // pred_check
              _
            $region64: #{_layer_forward.1} parent=61 // pred_check_branch
              %233 = sbr.rel (0) target = $region66
            $region65: #{_layer_forward.1} parent=61 // pred_region
              // Predicated region
              $region78: #{_layer_forward.1} parent=65 // pred_check
                _
              $region79: #{_layer_forward.1} parent=65 // pred_check_branch
                %251 = sbr.rel (0) target = $region81
              $region80: #{_layer_forward.1} parent=65 // pred_region
                loop: start=0, step=1, limit=1
                $region82: #{_layer_forward.1} parent=80 // loop_pre_header
                  _
                $region83: #{_layer_forward.1} parent=80 // loop_header
                  %s253 = sphi 0, %s257
                  %p254 = scmp.ge.s32.totalorder %s253, 1
                  %s258 = sphi %s229, %s229
                  %s259 = sphi %s227, %s227
                $region84: #{_layer_forward.1} parent=80 // loop_header_branch
                  %256 = sbr.rel (%p254) target = $region88
                $region85: #{_layer_forward.1} parent=80 // loop_body
                  %v260 = vld [vmem:[%s258] sm:$0xff]
                  %261 = vst [vmem:[%s259] sm:$0xff] %v260
                  %v262 = vld [vmem:[%s258 + $0x10] sm:$0xff]
                  %263 = vst [vmem:[%s259 + $0x8] sm:$0xff] %v262
                $region86: #{_layer_forward.1} parent=80 // loop_footer
                  %s257 = sadd.s32 1, %s253
                $region87: #{_layer_forward.1} parent=80 // loop_footer_branch
                  %252 = sbr.rel target = $region83
                $region88: #{_layer_forward.1} parent=80 // loop_exit
                  _
              $region81: #{_layer_forward.1} parent=65 // pred_fallthru
                _
              // Predicated region
              $region89: #{_layer_forward.1} parent=65 // pred_check
                _
              $region90: #{_layer_forward.1} parent=65 // pred_check_branch
                %265 = sbr.rel target = $region92
              $region91: #{_layer_forward.1} parent=65 // pred_region
                _
              $region92: #{_layer_forward.1} parent=65 // pred_fallthru
                _
            $region66: #{_layer_forward.1} parent=61 // pred_fallthru
              _
            // Predicated region
            $region67: #{_layer_forward.1} parent=61 // pred_check
              _
            $region68: #{_layer_forward.1} parent=61 // pred_check_branch
              %235 = sbr.rel target = $region70
            $region69: #{_layer_forward.1} parent=61 // pred_region
              %s237 = ssub.s32 256, 1
              loop: start=0, step=1, limit=1
              $region71: #{_layer_forward.1} parent=69 // loop_pre_header
                _
              $region72: #{_layer_forward.1} parent=69 // loop_header
                %s239 = sphi 0, %s243
                %p240 = scmp.ge.s32.totalorder %s239, 1
                %s244 = sphi %s229, %s229
                %s245 = sphi %s227, %s227
              $region73: #{_layer_forward.1} parent=69 // loop_header_branch
                %242 = sbr.rel (%p240) target = $region77
              $region74: #{_layer_forward.1} parent=69 // loop_body
                %v246 = vld [vmem:[%s244] sm:%s237]
                %247 = vst [vmem:[%s245] sm:%s237] %v246
                %v248 = vld [vmem:[%s244 + $0x10] sm:%s237]
                %249 = vst [vmem:[%s245 + $0x8] sm:%s237] %v248
              $region75: #{_layer_forward.1} parent=69 // loop_footer
                %s243 = sadd.s32 1, %s239
              $region76: #{_layer_forward.1} parent=69 // loop_footer_branch
                %238 = sbr.rel target = $region72
              $region77: #{_layer_forward.1} parent=69 // loop_exit
                _
            $region70: #{_layer_forward.1} parent=61 // pred_fallthru
              _
          $region62: #{_layer_forward.1} parent=57 // pred_fallthru
            _
          %266 = vnop
        $region58: #{_layer_forward.1} parent=15 // pred_fallthru
          _
        // Predicated region
        $region93: #{_layer_forward.1} parent=15 // pred_check
          %p267 = pneg %p94
        $region94: #{_layer_forward.1} parent=15 // pred_check_branch
          %269 = sbr.rel (%p267) target = $region96
        $region95: #{_layer_forward.1} parent=15 // pred_region
          %p270 = scmp.lt.s32.totalorder %s17, 1
          %s271 = scalar_select %p270, %s17, 1
          %s272 = scalar_lea.vmem %s2, %s271
        $region96: #{_layer_forward.1} parent=15 // pred_fallthru
          _
        // Predicated region
        $region97: #{_layer_forward.1} parent=15 // pred_check
          %p273 = pneg %p122
        $region98: #{_layer_forward.1} parent=15 // pred_check_branch
          %275 = sbr.rel (%p273) target = $region100
        $region99: #{_layer_forward.1} parent=15 // pred_region
          %s276 = sand.u32 %s112, 1
          %s277 = sand.u32 %s112, 1
          %s278 = smul.addr %s277, 16
          %s279 = scalar_lea.vmem [#allocation4], %s278
          %s280 = smul.addr %s18, 4
          %s281 = sadd.s32 %s17, %s280
          %s282 = smul.addr %s281, 8
          %s283 = scalar_lea.vmem %s3, %s282
          // Predicated region
          $region101: #{_layer_forward.1} parent=99 // pred_check
            _
          $region102: #{_layer_forward.1} parent=99 // pred_check_branch
            %285 = sbr.rel (0) target = $region104
          $region103: #{_layer_forward.1} parent=99 // pred_region
            // Predicated region
            $region105: #{_layer_forward.1} parent=103 // pred_check
              _
            $region106: #{_layer_forward.1} parent=103 // pred_check_branch
              %287 = sbr.rel (0) target = $region108
            $region107: #{_layer_forward.1} parent=103 // pred_region
              // Predicated region
              $region120: #{_layer_forward.1} parent=107 // pred_check
                _
              $region121: #{_layer_forward.1} parent=107 // pred_check_branch
                %305 = sbr.rel (0) target = $region123
              $region122: #{_layer_forward.1} parent=107 // pred_region
                loop: start=0, step=1, limit=1
                $region124: #{_layer_forward.1} parent=122 // loop_pre_header
                  _
                $region125: #{_layer_forward.1} parent=122 // loop_header
                  %s307 = sphi 0, %s311
                  %p308 = scmp.ge.s32.totalorder %s307, 1
                  %s312 = sphi %s283, %s283
                  %s313 = sphi %s279, %s279
                $region126: #{_layer_forward.1} parent=122 // loop_header_branch
                  %310 = sbr.rel (%p308) target = $region130
                $region127: #{_layer_forward.1} parent=122 // loop_body
                  %v314 = vld [vmem:[%s312] sm:$0xff]
                  %315 = vst [vmem:[%s313] sm:$0xff] %v314
                  %v316 = vld [vmem:[%s312 + $0x10] sm:$0xff]
                  %317 = vst [vmem:[%s313 + $0x8] sm:$0xff] %v316
                $region128: #{_layer_forward.1} parent=122 // loop_footer
                  %s311 = sadd.s32 1, %s307
                $region129: #{_layer_forward.1} parent=122 // loop_footer_branch
                  %306 = sbr.rel target = $region125
                $region130: #{_layer_forward.1} parent=122 // loop_exit
                  _
              $region123: #{_layer_forward.1} parent=107 // pred_fallthru
                _
              // Predicated region
              $region131: #{_layer_forward.1} parent=107 // pred_check
                _
              $region132: #{_layer_forward.1} parent=107 // pred_check_branch
                %319 = sbr.rel target = $region134
              $region133: #{_layer_forward.1} parent=107 // pred_region
                _
              $region134: #{_layer_forward.1} parent=107 // pred_fallthru
                _
            $region108: #{_layer_forward.1} parent=103 // pred_fallthru
              _
            // Predicated region
            $region109: #{_layer_forward.1} parent=103 // pred_check
              _
            $region110: #{_layer_forward.1} parent=103 // pred_check_branch
              %289 = sbr.rel target = $region112
            $region111: #{_layer_forward.1} parent=103 // pred_region
              %s291 = ssub.s32 256, 1
              loop: start=0, step=1, limit=1
              $region113: #{_layer_forward.1} parent=111 // loop_pre_header
                _
              $region114: #{_layer_forward.1} parent=111 // loop_header
                %s293 = sphi 0, %s297
                %p294 = scmp.ge.s32.totalorder %s293, 1
                %s298 = sphi %s283, %s283
                %s299 = sphi %s279, %s279
              $region115: #{_layer_forward.1} parent=111 // loop_header_branch
                %296 = sbr.rel (%p294) target = $region119
              $region116: #{_layer_forward.1} parent=111 // loop_body
                %v300 = vld [vmem:[%s298] sm:%s291]
                %301 = vst [vmem:[%s299] sm:%s291] %v300
                %v302 = vld [vmem:[%s298 + $0x10] sm:%s291]
                %303 = vst [vmem:[%s299 + $0x8] sm:%s291] %v302
              $region117: #{_layer_forward.1} parent=111 // loop_footer
                %s297 = sadd.s32 1, %s293
              $region118: #{_layer_forward.1} parent=111 // loop_footer_branch
                %292 = sbr.rel target = $region114
              $region119: #{_layer_forward.1} parent=111 // loop_exit
                _
            $region112: #{_layer_forward.1} parent=103 // pred_fallthru
              _
          $region104: #{_layer_forward.1} parent=99 // pred_fallthru
            _
          %320 = vnop
        $region100: #{_layer_forward.1} parent=15 // pred_fallthru
          _
      $region16: #{_layer_forward.1} parent=5 // pred_fallthru
        _
      %p321 = scmp.le.s32.totalorder 1, %s10
      %p322 = scmp.lt.s32.totalorder %s10, 5
      %p323 = pnand %p321, %p322
      %p324 = pneg %p323
      // Predicated region
      $region135: #{_layer_forward.1} parent=5 // pred_check
        _
      $region136: #{_layer_forward.1} parent=5 // pred_check_branch
        %326 = sbr.rel (%p323) target = $region138
      $region137: #{_layer_forward.1} parent=5 // pred_region
        %s327 = ssub.s32 %s10, 1
        %s328 = sand.u32 %s35, 1
        %s329 = sand.u32 %s35, 1
        %s330 = smul.addr %s329, 16
        %s331 = scalar_lea.vmem [#allocation2], %s330
        // Predicated region
        $region139: #{_layer_forward.1} parent=137 // pred_check
          %p332 = pneg %p48
        $region140: #{_layer_forward.1} parent=137 // pred_check_branch
          %334 = sbr.rel (%p332) target = $region142
        $region141: #{_layer_forward.1} parent=137 // pred_region
          _
        $region142: #{_layer_forward.1} parent=137 // pred_fallthru
          _
        %s335 = sand.u32 %s61, 1
        %s336 = sand.u32 %s61, 1
        %s337 = smul.addr %s336, 16
        %s338 = scalar_lea.vmem [#allocation3], %s337
        // Predicated region
        $region143: #{_layer_forward.1} parent=137 // pred_check
          %p339 = pneg %p74
        $region144: #{_layer_forward.1} parent=137 // pred_check_branch
          %341 = sbr.rel (%p339) target = $region146
        $region145: #{_layer_forward.1} parent=137 // pred_region
          _
        $region146: #{_layer_forward.1} parent=137 // pred_fallthru
          _
        %s342 = sand.u32 %s115, 1
        %s343 = sand.u32 %s115, 1
        %s344 = smul.addr %s343, 16
        %s345 = scalar_lea.vmem [#allocation4], %s344
        // Predicated region
        $region147: #{_layer_forward.1} parent=137 // pred_check
          %p346 = pneg %p128
        $region148: #{_layer_forward.1} parent=137 // pred_check_branch
          %348 = sbr.rel (%p346) target = $region150
        $region149: #{_layer_forward.1} parent=137 // pred_region
          _
        $region150: #{_layer_forward.1} parent=137 // pred_fallthru
          _
        %s349 = sand.u32 %s35, 1
        %s350 = sand.u32 %s35, 1
        %s351 = smul.addr %s350, 16
        %s352 = scalar_lea.vmem [#allocation2], %s351
        %p353 = pneg %p48
        %p354 = pneg %p45
        %s355 = sand.u32 %s61, 1
        %s356 = sand.u32 %s61, 1
        %s357 = smul.addr %s356, 16
        %s358 = scalar_lea.vmem [#allocation3], %s357
        %p359 = pneg %p74
        %p360 = pneg %p71
        %p361 = scmp.lt.s32.totalorder %s19, 1
        %s362 = scalar_select %p361, %s19, 1
        %s363 = scalar_lea.vmem %s2, %s362
        %p364 = pneg %p100
        %p365 = pneg %p97
        %s366 = sand.u32 %s115, 1
        %s367 = sand.u32 %s115, 1
        %s368 = smul.addr %s367, 16
        %s369 = scalar_lea.vmem [#allocation4], %s368
        %p370 = pneg %p128
        %p371 = pneg %p125
        %p372 = pneg %p156
        %p373 = pneg %p153
        %p374 = scmp.lt.s32.totalorder %s20, 1
        %s375 = scalar_select %p374, %s20, 1
        %p376 = scmp.lt.s32.totalorder %s19, 1
        %s377 = scalar_select %p376, %s19, 1
        %s378 = smul.addr %s375, 2
        %s379 = sadd.s32 %s377, %s378
        %s380 = smul.addr %s379, 2
        %s381 = scalar_lea.vmem %s4, %s380
        %p382 = scmp.lt.s32.totalorder %s19, 1
        %s383 = scalar_select %p382, %s19, 1
        %s384 = scalar_lea.vmem %s2, %s383
        %p385 = scmp.lt.s32.totalorder %s20, 1
        %s386 = scalar_select %p385, %s20, 1
        %p387 = scmp.lt.s32.totalorder %s19, 1
        %s388 = scalar_select %p387, %s19, 1
        %s389 = smul.addr %s386, 2
        %s390 = sadd.s32 %s388, %s389
        %s391 = smul.addr %s390, 2
        %s392 = scalar_lea.vmem %s4, %s391
        %v393 = vld [vmem:[%s345] sm:$0xff]
        %v394 = vld [vmem:[%s345 + $0x8] sm:$0xff]
        %v395 = vld [vmem:[%s331] sm:$0xff]
        %v396 = vld [vmem:[%s331 + $0x8] sm:$0xff]
        %v397 = vmul.f32 %v393, %v395
        %v398 = vmul.f32 %v394, %v396
        %v399 = vld [vmem:[%s338] sm:$0xff]
        %v400 = vld [vmem:[%s338 + $0x8] sm:$0xff]
        %v401 = vadd.f32 %v397, %v399
        %v402 = vadd.f32 %v398, %v400
        %v403 = vmul.f32 %v401, %v401
        %v404 = vmul.f32 %v402, %v402
        %v405 = vadd.f32 %v403, %v404
        %v406 = vrot.slane %v405, 4
        %v407 = vadd.f32 %v405, %v406
        %v408 = vrot.slane %v407, 2
        %v409 = vadd.f32 %v407, %v408
        %v410 = vrot.slane %v409, 1
        %v411 = vadd.f32 %v409, %v410
        %v412 = vmul.f32 %v411, 0.5
        %v413 = vsub.f32 -14.703016, %v412
        %v414 = vld [vmem:[%s384] sm:$0x1]
        %v415 = vadd.f32 %v413, %v414
        %v416 = vmul.f32 %v415, 0.0625
        %v417 = vsub.f32 0.0, %v416
        %v418 = vmax.f32 %v417, 0.0
        %v419 = vand.u32 2147483647, %v416
        %v420 = vsub.f32 0.0, %v419
        %v421 = vmul.f32 %v420, 1.442695
        %v422 = vpow.pop %v421
        %v423 = vadd.f32 %v422, 1.0
        %v424 = vlog2.pop %v423
        %v425 = vmul.f32 %v424, 0.6931472
        %v426 = vmul.f32 -0.5, %v422
        %v427 = vadd.f32 %v426, 1.0
        %v428 = vmul.f32 %v427, %v422
        %v429 = vand.u32 2147483647, %v422
        %vm430 = vcmp.lt.f32.partialorder %v429, 0.0004427343
        %v431 = vsel %vm430, %v428, %v425
        %v432 = vadd.f32 %v418, %v431
        %433 = vst [vmem:[%s392] sm:$0x1] %v416
        %434 = vst [vmem:[%s392 + $0x1] sm:$0x1] %v432
        %p435 = scmp.lt.s32.totalorder %s20, 1
        %s436 = scalar_select %p435, %s20, 1
        %p437 = scmp.lt.s32.totalorder %s19, 1
        %s438 = scalar_select %p437, %s19, 1
        %s439 = smul.addr %s436, 2
        %s440 = sadd.s32 %s438, %s439
        %s441 = smul.addr %s440, 2
        %s442 = scalar_lea.vmem %s4, %s441
        // Predicated region
        $region151: #{_layer_forward.1} parent=137 // pred_check
          %p443 = pneg %p153
        $region152: #{_layer_forward.1} parent=137 // pred_check_branch
          %445 = sbr.rel (%p443) target = $region154
        $region153: #{_layer_forward.1} parent=137 // pred_region
          _
        $region154: #{_layer_forward.1} parent=137 // pred_fallthru
          _
      $region138: #{_layer_forward.1} parent=5 // pred_fallthru
        _
      %p446 = scmp.le.s32.totalorder 2, %s10
      // Predicated region
      $region155: #{_layer_forward.1} parent=5 // pred_check
        %p447 = pneg %p446
      $region156: #{_layer_forward.1} parent=5 // pred_check_branch
        %449 = sbr.rel (%p447) target = $region158
      $region157: #{_layer_forward.1} parent=5 // pred_region
        %s450 = ssub.s32 %s10, 2
        // Predicated region
        $region159: #{_layer_forward.1} parent=157 // pred_check
          %p451 = pneg %p159
        $region160: #{_layer_forward.1} parent=157 // pred_check_branch
          %453 = sbr.rel (%p451) target = $region162
        $region161: #{_layer_forward.1} parent=157 // pred_region
          %p454 = scmp.lt.s32.totalorder %s22, 1
          %s455 = scalar_select %p454, %s22, 1
          %p456 = scmp.lt.s32.totalorder %s21, 1
          %s457 = scalar_select %p456, %s21, 1
          %s458 = smul.addr %s455, 2
          %s459 = sadd.s32 %s457, %s458
          %s460 = smul.addr %s459, 2
          %s461 = scalar_lea.vmem %s4, %s460
        $region162: #{_layer_forward.1} parent=157 // pred_fallthru
          _
      $region158: #{_layer_forward.1} parent=5 // pred_fallthru
        _
    $region6: #{_layer_forward.1} parent=1 // loop_footer
      %s14 = sadd.s32 1, %s10
    $region7: #{_layer_forward.1} parent=1 // loop_footer_branch
      %9 = sbr.rel target = $region3
    $region8: #{_layer_forward.1} parent=1 // loop_exit
      _

</llo_original>
